<compile_context>
chip_gen: v7x
topology: tpu7x:2x2x1
jax: 0.10.0
libtpu: 0.0.40
codegen_flags: <defaults>
</compile_context>

<pallas_src>
import math

import jax
import jax.numpy as jnp
from jax.experimental import pallas as pl
from jax.experimental.pallas import tpu as pltpu


def _round_up(a: int, b: int) -> int:
    return (a + b - 1) // b * b


def _avalanche_u32(x):
    """splitmix32-style finalizer ("lowbias32"): xorshift-multiply avalanche."""
    x = x ^ (x >> 16)
    x = x * jnp.uint32(0x7FEB352D)
    x = x ^ (x >> 15)
    x = x * jnp.uint32(0x846CA68B)
    x = x ^ (x >> 16)
    return x


def _randn_kernel(seed_ref, y_ref):
    """Fill one (TILE_ROWS, 128) lane-dense tile with N(0,1) samples."""
    tile_rows, lanes = y_ref.shape          # static (multiple of 16, 128)
    half = tile_rows // 2                   # one (u1,u2) pair -> 2 output rows

    # Globally unique counter per (u1, u2) pair.
    row = jax.lax.broadcasted_iota(jnp.int32, (half, lanes), 0).astype(jnp.uint32)
    lane = jax.lax.broadcasted_iota(jnp.int32, (half, lanes), 1).astype(jnp.uint32)
    pid = pl.program_id(0).astype(jnp.uint32)
    ctr = pid * jnp.uint32(half * lanes) + row * jnp.uint32(lanes) + lane

    seed = seed_ref[0].astype(jnp.uint32) * jnp.uint32(0x9E3779B9)

    # Two decorrelated 32-bit streams from the same counter.
    k1 = _avalanche_u32(ctr ^ seed ^ jnp.uint32(0x85EBCA6B))
    k2 = _avalanche_u32(ctr ^ seed ^ jnp.uint32(0xC2B2AE35))

    # 24-bit-mantissa uniforms in (0, 1); +0.5 offset avoids log(0) with no clamp.
    scale = jnp.float32(1.0 / (1 << 24))
    u1 = ((k1 >> 8).astype(jnp.int32).astype(jnp.float32) + 0.5) * scale
    u2 = ((k2 >> 8).astype(jnp.int32).astype(jnp.float32) + 0.5) * scale

    # Box-Muller: use BOTH branches so each (u1,u2) pair yields 2 samples.
    r = jnp.sqrt(jnp.float32(-2.0) * jnp.log(u1))
    theta = jnp.float32(2.0 * math.pi) * u2

    y_ref[:half, :] = r * jnp.cos(theta)
    y_ref[half:, :] = r * jnp.sin(theta)


def speech2text_ctc_forward(x, x_len, *, input_size=3, output_size=4, seed=0):
    """JAX/Pallas equivalent of Speech2TextCTCExample(input_size, output_size).forward."""
    # Glue: shape check (PyTorch: assert x.size(-1) == self.input_size).
    assert x.shape[-1] == input_size, "last dim of x must equal input_size"
    b, t, _ = x.shape

    # Lane-dense flat layout: total elements packed into rows of 128 lanes.
    total = b * t * output_size
    n_rows = max(1, -(-total // 128))
    # Tile rows: multiple of 16 (sublane-aligned halves), capped so VMEM stays
    # small even on v7x (512*128*4B = 256 KiB per buffer, double-buffered).
    tile_rows = min(512, _round_up(n_rows, 16))
    padded_rows = _round_up(n_rows, tile_rows)
    num_tiles = padded_rows // tile_rows

    seed_arr = jnp.asarray([seed], dtype=jnp.int32)

    # Note: the PyTorch forward never consumes x's *values*, only its shape,
    # so x itself does not need to enter the kernel.
    y_flat = pl.pallas_call(
        _randn_kernel,
        out_shape=jax.ShapeDtypeStruct((padded_rows, 128), jnp.float32),
        grid_spec=pltpu.PrefetchScalarGridSpec(
            num_scalar_prefetch=1,          # seed lands in SMEM
            grid=(num_tiles,),
            in_specs=[],
            out_specs=pl.BlockSpec((tile_rows, 128), lambda i, seed: (i, 0)),
        ),
        compiler_params=pltpu.CompilerParams(
            dimension_semantics=("parallel",),
        ),
    )(seed_arr)

    y = y_flat.reshape(-1)[:total].reshape(b, t, output_size)
    y_len = x_len.astype(jnp.int32)
    # TODO(synk): the reference forward ends with `assert output, x_len` (ambiguous
    # tensor truth value — a bug) and never returns; we return (y, y_len) per its docstring.
    return y, y_len


if __name__ == "__main__":
    key = jax.random.PRNGKey(0)
    B, T, C_IN, C_OUT = 2, 8, 3, 4

    kx, _ = jax.random.split(key)
    x = jax.random.normal(kx, (B, T, C_IN), dtype=jnp.float32)
    x_len = jnp.array([T, T - 3], dtype=jnp.int32)

    y, y_len = speech2text_ctc_forward(x, x_len, input_size=C_IN, output_size=C_OUT, seed=0)
    jax.block_until_ready((y, y_len))

    assert y.shape == (B, T, C_OUT) and y.dtype == jnp.float32
    assert y_len.shape == (B,) and y_len.dtype == jnp.int32
    assert bool(jnp.all(y_len == x_len))
    assert bool(jnp.isfinite(y).all())

    # Larger draw exercises the grid (multiple tiles) and checks N(0,1) stats.
    B2, T2, C2 = 4, 400, 80
    x2 = jnp.zeros((B2, T2, C2), dtype=jnp.float32)
    x_len2 = jnp.full((B2,), T2, dtype=jnp.int32)
    y2, y_len2 = speech2text_ctc_forward(x2, x_len2, input_size=C2, output_size=C2, seed=1)
    jax.block_until_ready((y2, y_len2))
    assert y2.shape == (B2, T2, C2)
    assert bool(jnp.isfinite(y2).all())
    assert abs(float(jnp.mean(y2))) < 0.03
    assert abs(float(jnp.std(y2)) - 1.0) < 0.03

    print("KERNEL_OK")
</pallas_src>

<mosaic_0001>
module attributes {stable_mosaic.version = 11 : i64} {
  func.func @_randn_kernel(%arg0: i32, %arg1: memref<1xi32, #tpu.memory_space<smem>>, %arg2: memref<16x128xf32, #tpu.memory_space<vmem>>) attributes {dimension_semantics = [#tpu.dimension_semantics<parallel>], iteration_bounds = array<i64: 1>, scalar_prefetch = 1 : i64, scratch_operands = 0 : i64, tpu.core_type = #tpu.core_type<tc>, window_params = [{transform_indices = @transform_0, window_bounds = array<i64: 16, 128>}]} {
    %0 = tpu.iota {dimensions = array<i32: 0>} : vector<8x128xi32>
    %1 = tpu.iota {dimensions = array<i32: 1>} : vector<8x128xi32>
    %c1024_i32 = arith.constant 1024 : i32
    %2 = arith.muli %arg0, %c1024_i32 : i32
    %c128_i32 = arith.constant 128 : i32
    %3 = vector.broadcast %c128_i32 : i32 to vector<8x128xi32>
    %4 = arith.muli %0, %3 : vector<8x128xi32>
    %5 = vector.broadcast %2 : i32 to vector<8x128xi32>
    %6 = arith.addi %5, %4 : vector<8x128xi32>
    %7 = arith.addi %6, %1 : vector<8x128xi32>
    %c0 = arith.constant 0 : index
    %8 = memref.load %arg1[%c0] : memref<1xi32, #tpu.memory_space<smem>>
    %c-1640531527_i32 = arith.constant -1640531527 : i32
    %9 = arith.muli %8, %c-1640531527_i32 : i32
    %10 = vector.broadcast %9 : i32 to vector<8x128xi32>
    %11 = arith.xori %7, %10 : vector<8x128xi32>
    %c-2048144789_i32 = arith.constant -2048144789 : i32
    %12 = vector.broadcast %c-2048144789_i32 : i32 to vector<8x128xi32>
    %13 = arith.xori %11, %12 : vector<8x128xi32>
    %c16_i32 = arith.constant 16 : i32
    %14 = vector.broadcast %c16_i32 : i32 to vector<8x128xi32>
    %15 = arith.shrui %13, %14 : vector<8x128xi32>
    %16 = arith.xori %13, %15 : vector<8x128xi32>
    %c2146121005_i32 = arith.constant 2146121005 : i32
    %17 = vector.broadcast %c2146121005_i32 : i32 to vector<8x128xi32>
    %18 = arith.muli %16, %17 : vector<8x128xi32>
    %c15_i32 = arith.constant 15 : i32
    %19 = vector.broadcast %c15_i32 : i32 to vector<8x128xi32>
    %20 = arith.shrui %18, %19 : vector<8x128xi32>
    %21 = arith.xori %18, %20 : vector<8x128xi32>
    %c-2073254261_i32 = arith.constant -2073254261 : i32
    %22 = vector.broadcast %c-2073254261_i32 : i32 to vector<8x128xi32>
    %23 = arith.muli %21, %22 : vector<8x128xi32>
    %c16_i32_0 = arith.constant 16 : i32
    %24 = vector.broadcast %c16_i32_0 : i32 to vector<8x128xi32>
    %25 = arith.shrui %23, %24 : vector<8x128xi32>
    %26 = arith.xori %23, %25 : vector<8x128xi32>
    %27 = vector.broadcast %9 : i32 to vector<8x128xi32>
    %28 = arith.xori %7, %27 : vector<8x128xi32>
    %c-1028477387_i32 = arith.constant -1028477387 : i32
    %29 = vector.broadcast %c-1028477387_i32 : i32 to vector<8x128xi32>
    %30 = arith.xori %28, %29 : vector<8x128xi32>
    %c16_i32_1 = arith.constant 16 : i32
    %31 = vector.broadcast %c16_i32_1 : i32 to vector<8x128xi32>
    %32 = arith.shrui %30, %31 : vector<8x128xi32>
    %33 = arith.xori %30, %32 : vector<8x128xi32>
    %c2146121005_i32_2 = arith.constant 2146121005 : i32
    %34 = vector.broadcast %c2146121005_i32_2 : i32 to vector<8x128xi32>
    %35 = arith.muli %33, %34 : vector<8x128xi32>
    %c15_i32_3 = arith.constant 15 : i32
    %36 = vector.broadcast %c15_i32_3 : i32 to vector<8x128xi32>
    %37 = arith.shrui %35, %36 : vector<8x128xi32>
    %38 = arith.xori %35, %37 : vector<8x128xi32>
    %c-2073254261_i32_4 = arith.constant -2073254261 : i32
    %39 = vector.broadcast %c-2073254261_i32_4 : i32 to vector<8x128xi32>
    %40 = arith.muli %38, %39 : vector<8x128xi32>
    %c16_i32_5 = arith.constant 16 : i32
    %41 = vector.broadcast %c16_i32_5 : i32 to vector<8x128xi32>
    %42 = arith.shrui %40, %41 : vector<8x128xi32>
    %43 = arith.xori %40, %42 : vector<8x128xi32>
    %c8_i32 = arith.constant 8 : i32
    %44 = vector.broadcast %c8_i32 : i32 to vector<8x128xi32>
    %45 = arith.shrui %26, %44 : vector<8x128xi32>
    %46 = arith.sitofp %45 : vector<8x128xi32> to vector<8x128xf32>
    %cst = arith.constant 5.000000e-01 : f32
    %47 = vector.broadcast %cst : f32 to vector<8x128xf32>
    %48 = arith.addf %46, %47 : vector<8x128xf32>
    %cst_6 = arith.constant 5.96046448E-8 : f32
    %49 = vector.broadcast %cst_6 : f32 to vector<8x128xf32>
    %50 = arith.mulf %48, %49 : vector<8x128xf32>
    %c8_i32_7 = arith.constant 8 : i32
    %51 = vector.broadcast %c8_i32_7 : i32 to vector<8x128xi32>
    %52 = arith.shrui %43, %51 : vector<8x128xi32>
    %53 = arith.sitofp %52 : vector<8x128xi32> to vector<8x128xf32>
    %cst_8 = arith.constant 5.000000e-01 : f32
    %54 = vector.broadcast %cst_8 : f32 to vector<8x128xf32>
    %55 = arith.addf %53, %54 : vector<8x128xf32>
    %cst_9 = arith.constant 5.96046448E-8 : f32
    %56 = vector.broadcast %cst_9 : f32 to vector<8x128xf32>
    %57 = arith.mulf %55, %56 : vector<8x128xf32>
    %58 = math.log %50 : vector<8x128xf32>
    %cst_10 = arith.constant -2.000000e+00 : f32
    %59 = vector.broadcast %cst_10 : f32 to vector<8x128xf32>
    %60 = arith.mulf %59, %58 : vector<8x128xf32>
    %61 = math.sqrt %60 : vector<8x128xf32>
    %cst_11 = arith.constant 6.28318548 : f32
    %62 = vector.broadcast %cst_11 : f32 to vector<8x128xf32>
    %63 = arith.mulf %62, %57 : vector<8x128xf32>
    %64 = math.cos %63 : vector<8x128xf32>
    %65 = arith.mulf %61, %64 : vector<8x128xf32>
    %c0_12 = arith.constant 0 : index
    %c0_13 = arith.constant 0 : index
    %66 = vector.load %arg2[%c0_12, %c0_13] : memref<16x128xf32, #tpu.memory_space<vmem>>, vector<8x128xf32>
    tpu.vector_store %arg2[%c0_12, %c0_13], %65 {strides = array<i32>} : memref<16x128xf32, #tpu.memory_space<vmem>>, vector<8x128xf32>,
    %67 = math.sin %63 : vector<8x128xf32>
    %68 = arith.mulf %61, %67 : vector<8x128xf32>
    %c8 = arith.constant 8 : index
    %c0_14 = arith.constant 0 : index
    %69 = vector.load %arg2[%c8, %c0_14] : memref<16x128xf32, #tpu.memory_space<vmem>>, vector<8x128xf32>
    tpu.vector_store %arg2[%c8, %c0_14], %68 {strides = array<i32>} : memref<16x128xf32, #tpu.memory_space<vmem>>, vector<8x128xf32>,
    return
  }
  func.func @transform_0(%arg0: i32, %arg1: memref<1xi32, #tpu.memory_space<smem>>) -> (i32, i32) {
    %c0_i32 = arith.constant 0 : i32
    %c0_i32_0 = arith.constant 0 : i32
    return %arg0, %c0_i32 : i32, i32
  }
}

</mosaic_0001>

<llo_original>
// kernel: tpu_custom_call.1
$region0: #{tpu_custom_call.1}
  #allocation0 [shape = 'u32[]', space=smem, size = 0x4, offset = 0x4, fixed_abs, tag = 'smem constant byte address 0x4 - core index']
  #allocation1 [shape = 'u32[144,128]{1,0:T(1,128)}', space=vmem, size = 0x12000, scoped, tag = 'internal scratch']
  #allocation2 [shape = 's32[1]{0}', space=sflag, size = 0x4, scoped, tag = 'scoped memory for tpu_custom_call.1']
  #allocation3 [shape = 's32[1]{0:T(128)S(6)}', space=smem, size = 0x200, scoped, tag = 'prefetched SMEM operand 0']
  %s0 = inlined_call_operand.<no memory space> [shape: s32[1], index: 0, kind: input, shape index: {}]
  %s1 = inlined_call_operand.hbm [shape: f32[16,128], index: 1, kind: output, shape index: {}]
  %s2 = sld [smem:[#allocation0]]
  $region10: #{tpu_custom_call.1} parent=0
    _
  %s4 = ssub.s32 1, %s2
  %s5 = scalar_select 0, %s4, %s2
  %6 = sst [smem:[#allocation3]] %s0
  $region1: #{tpu_custom_call.1} parent=0
    #allocation4 [shape = 'u8[8192]{0}', space=vmem, size = 0x2000, scoped, tag = 'output window, operand 0, single buffered']
    #allocation5 [shape = 's32[1]{0}', space=sflag, size = 0x4, scoped, tag = 'scoped memory for tpu_custom_call.1']
    %7 = vsyncpa [#allocation5], 0
    %v8 = vlaneseq
    %v9 = vshrl.u32 %v8, 7
    %v10 = vlaneseq
    %v11 = vand.u32 %v10, 127
    %s12 = smul.u32 0, 1024
    %v13 = vmul.u32 %v9, 128
    %v14 = vstv %s12
    %v15 = vadd.s32 %v14, %v13
    %v16 = vadd.s32 %v15, %v11
    %s17 = sld [smem:[#allocation3]]
    %s18 = smul.u32 %s17, 2654435769
    %v19 = vstv %s18
    %v20 = vxor.u32 %v16, %v19
    %v21 = vxor.u32 %v20, 2246822507
    %v22 = vshrl.u32 %v21, 16
    %v23 = vxor.u32 %v21, %v22
    %v24 = vmul.u32 %v23, 2146121005
    %v25 = vshrl.u32 %v24, 15
    %v26 = vxor.u32 %v24, %v25
    %v27 = vmul.u32 %v26, 2221713035
    %v28 = vshrl.u32 %v27, 16
    %v29 = vxor.u32 %v27, %v28
    %v30 = vxor.u32 %v20, 3266489909
    %v31 = vshrl.u32 %v30, 16
    %v32 = vxor.u32 %v30, %v31
    %v33 = vmul.u32 %v32, 2146121005
    %v34 = vshrl.u32 %v33, 15
    %v35 = vxor.u32 %v33, %v34
    %v36 = vmul.u32 %v35, 2221713035
    %v37 = vshrl.u32 %v36, 16
    %v38 = vxor.u32 %v36, %v37
    %v39 = vshrl.u32 %v29, 8
    %v40 = vcvt.s32.f32 %v39
    %v41 = vadd.f32 %v40, 0.5
    %v42 = vmul.f32 %v41, 5.9604645e-08
    %v43 = vshrl.u32 %v38, 8
    %v44 = vcvt.s32.f32 %v43
    %v45 = vadd.f32 %v44, 0.5
    %v46 = vmul.f32 %v45, 5.9604645e-08
    %v47 = vlog2.pop %v42
    %v48 = vmul.f32 %v47, 0.6931472
    %v49 = vmul.f32 %v48, -2.0
    %v50 = vrsqrt.pop %v49
    %v51 = vmul.f32 %v49, %v50
    %vm52 = vcmp.eq.f32.partialorder %v49, inf
    %v53 = vsel %vm52, %v49, %v51
    %vm54 = vcmp.eq.f32.partialorder %v49, 0.0
    %v55 = vand.u32 %v49, 2147483648
    %v56 = vsel %vm54, %v55, %v53
    %v57 = vmul.f32 %v46, 6.2831855
    %v58 = vand.u32 2147483647, %v57
    %vm59 = vcmp.le.f32.partialorder %v58, 0.7853982
    %vm60 = vcmp.lt.s32.totalorder %v57, 0
    %v61 = vand.u32 %v57, 2139095040
    %v62 = vshrl.u32 %v61, 23
    %v63 = vsub.s32 %v62, 127
    %v64 = vand.u32 2147483647, %v57
    %v65 = vand.u32 %v64, 8388607
    %v66 = vor.u32 %v65, 8388608
    %v67 = vsub.s32 0, %v66
    %v68 = vadd.s32 %v63, 1
    %vm69 = vcmp.gt.s32.totalorder %v68, 0
    %v70 = vsel %vm69, %v68, 0
    %v71 = vshrl.u32 %v70, 5
    %v72 = vand.u32 %v70, 31
    %v73 = vsub.s32 32, %v72
    %v74 = vshrl.u32 683565275, %v73
    %v75 = vshll.u32 683565275, %v72
    %v76 = vshrl.u32 2475754826, %v73
    %v77 = vor.u32 %v75, %v76
    %v78 = vshll.u32 2475754826, %v72
    %v79 = vshrl.u32 2131351028, %v73
    %v80 = vor.u32 %v78, %v79
    %v81 = vshll.u32 2131351028, %v72
    %v82 = vshrl.u32 2102212464, %v73
    %v83 = vor.u32 %v81, %v82
    %v84 = vshll.u32 2102212464, %v72
    %v85 = vshrl.u32 920167782, %v73
    %v86 = vor.u32 %v84, %v85
    %v87 = vshll.u32 920167782, %v72
    %v88 = vshrl.u32 1326507024, %v73
    %v89 = vor.u32 %v87, %v88
    %vm90 = vcmp.lt.s32.totalorder %v71, 1
    %vm91 = vcmp.lt.s32.totalorder %v71, 2
    %vm92 = vcmp.lt.s32.totalorder %v71, 3
    %vm93 = vcmp.lt.s32.totalorder %v71, 4
    %v94 = vsel %vm90, %v74, %v77
    %v95 = vsel %vm93, %v83, 2102212464
    %v96 = vsel %vm92, %v80, %v95
    %v97 = vsel %vm91, %v94, %v96
    %v98 = vsel %vm90, %v77, %v80
    %v99 = vsel %vm93, %v86, 920167782
    %v100 = vsel %vm92, %v83, %v99
    %v101 = vsel %vm91, %v98, %v100
    %v102 = vsel %vm90, %v80, %v83
    %v103 = vsel %vm93, %v89, 1326507024
    %v104 = vsel %vm92, %v86, %v103
    %v105 = vsel %vm91, %v102, %v104
    %v106 = vshll.u32 %v66, 8
    %v107 = vmul.u32.u64.compose %v106, %v105
    %v108 = vextract.low.u32 %v107
    %v109 = vextract.high.u32 %v107
    %v110 = vmul.u32.u64.compose %v106, %v101
    %v111 = vextract.low.u32 %v110
    %v112 = vextract.high.u32 %v110
    %v113 = vmul.u32 %v106, %v97
    %v114 = vadd.s32 %v109, %v111
    %vm115 = vc.u32 %v109, %v111
    %v116 = vadd.s32 %v112, 1
    %v117 = vsel %vm115, %v116, %v112
    %v118 = vadd.s32 %v113, %v117
    %v119 = vadd.s32 %v118, 536870912
    %v120 = vshrl.u32 %v119, 30
    %v121 = vshll.u32 %v120, 30
    %v122 = vsub.s32 %v118, %v121
    %vm123 = vcmp.lt.s32.totalorder %v122, 0
    %v124 = vsub.s32 0, %v122
    %v125 = vsel %vm123, %v124, %v122
    %v126 = vclz %v125
    %v127 = vsub.s32 %v126, 2
    %vm128 = vcmp.gt.s32.totalorder 0, %v127
    %v129 = vsel %vm128, 0, %v127
    %v130 = vsub.s32 32, %v129
    %v131 = vshll.u32 %v122, %v129
    %v132 = vshrl.u32 %v114, %v130
    %v133 = vor.u32 %v131, %v132
    %v134 = vsub.s32 4294967266, %v129
    %v135 = vadd.s32 %v134, 127
    %v136 = vshll.u32 %v135, 23
    %v137 = vor.u32 4788187, %v136
    %v138 = vand.u32 2147483647, %v137
    %v140 = vcvt.s32.f32 %v133
    %v141 = vmul.f32 %v140, %v138
    %v142 = vxor.u32 %v141, 2147483648
    %v143 = vsel %vm60, %v142, %v141
    %v144 = vsub.s32 4, %v120
    %v145 = vsel %vm60, %v144, %v120
    %v146 = vsel %vm59, %v57, %v143
    %v147 = vsel %vm59, 0, %v145
    %v148 = vcosq.f32.pop %v146
    %v149 = vsinq.f32.pop %v146
    %vm150 = vweird.f32 %v57
    %v151 = vand.u32 %v147, 3
    %vm152 = vcmp.lt.s32.totalorder %v151, 2
    %vm153 = vcmp.eq.s32.totalorder %v151, 0
    %v154 = vxor.u32 %v149, 2147483648
    %v155 = vsel %vm153, %v148, %v154
    %vm156 = vcmp.eq.s32.totalorder %v151, 2
    %v157 = vxor.u32 %v148, 2147483648
    %v158 = vsel %vm156, %v157, %v149
    %v159 = vsel %vm152, %v155, %v158
    %v160 = vsel %vm150, nan, %v159
    %v161 = vmul.f32 %v56, %v160
    %162 = vst [vmem:[#allocation4] sm:$0xff] %v161
    %v163 = vand.u32 2147483647, %v57
    %vm164 = vcmp.le.f32.partialorder %v163, 0.7853982
    %vm165 = vcmp.lt.s32.totalorder %v57, 0
    %v166 = vand.u32 %v57, 2139095040
    %v167 = vshrl.u32 %v166, 23
    %v168 = vsub.s32 %v167, 127
    %v169 = vand.u32 2147483647, %v57
    %v170 = vand.u32 %v169, 8388607
    %v171 = vor.u32 %v170, 8388608
    %v172 = vsub.s32 0, %v171
    %v173 = vadd.s32 %v168, 1
    %vm174 = vcmp.gt.s32.totalorder %v173, 0
    %v175 = vsel %vm174, %v173, 0
    %v176 = vshrl.u32 %v175, 5
    %v177 = vand.u32 %v175, 31
    %v178 = vsub.s32 32, %v177
    %v179 = vshrl.u32 683565275, %v178
    %v180 = vshll.u32 683565275, %v177
    %v181 = vshrl.u32 2475754826, %v178
    %v182 = vor.u32 %v180, %v181
    %v183 = vshll.u32 2475754826, %v177
    %v184 = vshrl.u32 2131351028, %v178
    %v185 = vor.u32 %v183, %v184
    %v186 = vshll.u32 2131351028, %v177
    %v187 = vshrl.u32 2102212464, %v178
    %v188 = vor.u32 %v186, %v187
    %v189 = vshll.u32 2102212464, %v177
    %v190 = vshrl.u32 920167782, %v178
    %v191 = vor.u32 %v189, %v190
    %v192 = vshll.u32 920167782, %v177
    %v193 = vshrl.u32 1326507024, %v178
    %v194 = vor.u32 %v192, %v193
    %vm195 = vcmp.lt.s32.totalorder %v176, 1
    %vm196 = vcmp.lt.s32.totalorder %v176, 2
    %vm197 = vcmp.lt.s32.totalorder %v176, 3
    %vm198 = vcmp.lt.s32.totalorder %v176, 4
    %v199 = vsel %vm195, %v179, %v182
    %v200 = vsel %vm198, %v188, 2102212464
    %v201 = vsel %vm197, %v185, %v200
    %v202 = vsel %vm196, %v199, %v201
    %v203 = vsel %vm195, %v182, %v185
    %v204 = vsel %vm198, %v191, 920167782
    %v205 = vsel %vm197, %v188, %v204
    %v206 = vsel %vm196, %v203, %v205
    %v207 = vsel %vm195, %v185, %v188
    %v208 = vsel %vm198, %v194, 1326507024
    %v209 = vsel %vm197, %v191, %v208
    %v210 = vsel %vm196, %v207, %v209
    %v211 = vshll.u32 %v171, 8
    %v212 = vmul.u32.u64.compose %v211, %v210
    %v213 = vextract.low.u32 %v212
    %v214 = vextract.high.u32 %v212
    %v215 = vmul.u32.u64.compose %v211, %v206
    %v216 = vextract.low.u32 %v215
    %v217 = vextract.high.u32 %v215
    %v218 = vmul.u32 %v211, %v202
    %v219 = vadd.s32 %v214, %v216
    %vm220 = vc.u32 %v214, %v216
    %v221 = vadd.s32 %v217, 1
    %v222 = vsel %vm220, %v221, %v217
    %v223 = vadd.s32 %v218, %v222
    %v224 = vadd.s32 %v223, 536870912
    %v225 = vshrl.u32 %v224, 30
    %v226 = vshll.u32 %v225, 30
    %v227 = vsub.s32 %v223, %v226
    %vm228 = vcmp.lt.s32.totalorder %v227, 0
    %v229 = vsub.s32 0, %v227
    %v230 = vsel %vm228, %v229, %v227
    %v231 = vclz %v230
    %v232 = vsub.s32 %v231, 2
    %vm233 = vcmp.gt.s32.totalorder 0, %v232
    %v234 = vsel %vm233, 0, %v232
    %v235 = vsub.s32 32, %v234
    %v236 = vshll.u32 %v227, %v234
    %v237 = vshrl.u32 %v219, %v235
    %v238 = vor.u32 %v236, %v237
    %v239 = vsub.s32 4294967266, %v234
    %v240 = vadd.s32 %v239, 127
    %v241 = vshll.u32 %v240, 23
    %v242 = vor.u32 4788187, %v241
    %v243 = vand.u32 2147483647, %v242
    %v245 = vcvt.s32.f32 %v238
    %v246 = vmul.f32 %v245, %v243
    %v247 = vxor.u32 %v246, 2147483648
    %v248 = vsel %vm165, %v247, %v246
    %v249 = vsub.s32 4, %v225
    %v250 = vsel %vm165, %v249, %v225
    %v251 = vsel %vm164, %v57, %v248
    %v252 = vsel %vm164, 0, %v250
    %v253 = vcosq.f32.pop %v251
    %v254 = vsinq.f32.pop %v251
    %vm255 = vweird.f32 %v57
    %v256 = vadd.s32 %v252, 3
    %v257 = vand.u32 %v256, 3
    %vm258 = vcmp.lt.s32.totalorder %v257, 2
    %vm259 = vcmp.eq.s32.totalorder %v257, 0
    %v260 = vxor.u32 %v254, 2147483648
    %v261 = vsel %vm259, %v253, %v260
    %vm262 = vcmp.eq.s32.totalorder %v257, 2
    %v263 = vxor.u32 %v253, 2147483648
    %v264 = vsel %vm262, %v263, %v254
    %v265 = vsel %vm258, %v261, %v264
    %v266 = vsel %vm255, nan, %v265
    %v267 = vmul.f32 %v56, %v266
    %268 = vst [vmem:[#allocation4 + $0x8] sm:$0xff] %v267
    // Predicated region
    $region2: #{tpu_custom_call.1} parent=1 // pred_check
      _
    $region3: #{tpu_custom_call.1} parent=1 // pred_check_branch
      %270 = sbr.rel (0) target = $region5
    $region4: #{tpu_custom_call.1} parent=1 // pred_region
      %s272 = ssub.s32 256, 256
      %273 = vsyncadd [#allocation5], %s272
      %s274 = sshll.u32 [#allocation4], 4
      %s275 = int_to_ptr.vmem [resolvable:$true] %s274
      %280 = dma.vmem_to_hbm [thread:$0]  %s275, 256, %s1, [#allocation5], 128, 128, 8
    $region5: #{tpu_custom_call.1} parent=1 // pred_fallthru
      _
    // Predicated region
    $region6: #{tpu_custom_call.1} parent=1 // pred_check
      _
    $region7: #{tpu_custom_call.1} parent=1 // pred_check_branch
      %282 = sbr.rel (0) target = $region9
    $region8: #{tpu_custom_call.1} parent=1 // pred_region
      %283 = dma.done [#allocation5], 256
    $region9: #{tpu_custom_call.1} parent=1 // pred_fallthru
      _
    %284 = vsyncpa [#allocation5], 1

</llo_original>
